<compile_context>
chip_gen: v6e
topology: v6e:2x2x1
jax: 0.10.0
libtpu: 0.0.40
codegen_flags: <defaults>
</compile_context>

<pallas_src>
import jax
import jax.numpy as jnp
from jax.experimental import pallas as pl
from jax.experimental.pallas import tpu as pltpu

VOCAB = 50000
EMBED = 300
HIDDEN = 2000
NGATES = 4                  # PyTorch gate order: [i, f, g, o]

H_PAD = 2048                # 2000 -> 2048 (multiple of 128 -> lane-dense, unmasked stores)
GCOLS = NGATES * H_PAD      # 8192 packed gate columns
CHUNK = 512                 # gate-column chunk processed per MXU call
NCHUNK = H_PAD // CHUNK

TOK_BLOCK = 128             # embedding-gather tokens per grid step (bounds VMEM for long T)
GATHER_DEPTH = 8            # embedding row DMAs kept in flight


# ----------------------------------------------------------------------------
# Embedding gather kernel: pipelined manual row DMAs from the HBM table,
# chunked over a grid axis so the VMEM output block is bounded.
# ----------------------------------------------------------------------------
def _embed_kernel(ids_ref, emb_hbm, out_ref, sem):
    base = pl.program_id(0) * TOK_BLOCK

    def copy_for(j):
        return pltpu.make_async_copy(
            emb_hbm.at[pl.ds(ids_ref[base + j], 1)],
            out_ref.at[pl.ds(j, 1)],
            sem.at[j % GATHER_DEPTH])

    # Prime the pipeline: GATHER_DEPTH row gathers in flight.
    for j in range(GATHER_DEPTH):
        copy_for(j).start()

    def body(j, carry):
        copy_for(j).wait()

        @pl.when(j + GATHER_DEPTH < TOK_BLOCK)
        def _():
            copy_for(j + GATHER_DEPTH).start()

        return carry

    jax.lax.fori_loop(0, TOK_BLOCK, body, 0)


def embedding_lookup(ids_pad, emb_table):
    n_tok_pad = ids_pad.shape[0]
    n_blocks = n_tok_pad // TOK_BLOCK
    return pl.pallas_call(
        _embed_kernel,
        out_shape=jax.ShapeDtypeStruct((n_tok_pad, EMBED), emb_table.dtype),
        grid_spec=pltpu.PrefetchScalarGridSpec(
            num_scalar_prefetch=1,
            grid=(n_blocks,),
            in_specs=[pl.BlockSpec(memory_space=pl.ANY)],     # table stays in HBM
            out_specs=pl.BlockSpec((TOK_BLOCK, EMBED), lambda i, ids: (i, 0)),
            scratch_shapes=[pltpu.SemaphoreType.DMA((GATHER_DEPTH,))],
        ),
        compiler_params=pltpu.CompilerParams(
            dimension_semantics=("arbitrary",),
        ),
    )(ids_pad, emb_table)


# ----------------------------------------------------------------------------
# Single-layer LSTM recurrence kernel.
#   grid = (T,)  -- purely the sequential time recurrence.
#   gx (pre-computed input projection + bias) is streamed one timestep per step.
#   W_hh^T lives in HBM (pl.ANY), DMA'd once at t==0 into a resident bf16 VMEM
#   scratch.  h carry is bf16 scratch; c carry and gate math are f32.
# ----------------------------------------------------------------------------
def _lstm_kernel(gx_ref, whh_hbm, out_ref, cN_ref, whh_sc, h_sc, c_sc, sem):
    t = pl.program_id(0)

    @pl.when(t == 0)
    def _init():
        h_sc[...] = jnp.zeros_like(h_sc)
        c_sc[...] = jnp.zeros_like(c_sc)
        cp = pltpu.make_async_copy(whh_hbm, whh_sc, sem.at[0])
        cp.start()
        cp.wait()

    # Previous hidden state, loaded ONCE before any h_sc writes this step
    # (all four gates of every chunk must see h_{t-1}).
    h_bf = h_sc[...]                         # (B_pad, H_PAD) bf16

    # Process the padded hidden dimension in lane-dense 512-wide chunks.
    for k in range(NCHUNK):
        lo = k * CHUNK

        def pre(g, lo=lo):
            col = g * H_PAD + lo
            return (jnp.dot(h_bf, whh_sc[:, col:col + CHUNK],
                            preferred_element_type=jnp.float32)
                    + gx_ref[0, :, col:col + CHUNK])

        i_g = jax.nn.sigmoid(pre(0))
        f_g = jax.nn.sigmoid(pre(1))
        g_g = jnp.tanh(pre(2))
        o_g = jax.nn.sigmoid(pre(3))

        c_new = f_g * c_sc[:, lo:lo + CHUNK] + i_g * g_g
        h_new = o_g * jnp.tanh(c_new)        # f32

        c_sc[:, lo:lo + CHUNK] = c_new
        out_ref[0, :, lo:lo + CHUNK] = h_new                  # f32 output
        h_sc[:, lo:lo + CHUNK] = h_new.astype(jnp.bfloat16)   # bf16 carry

    @pl.when(t == pl.num_programs(0) - 1)
    def _final():
        cN_ref[0] = c_sc[...]


def lstm_forward(gx, w_hh_t):
    T, B_pad, _ = gx.shape
    out_shape = (
        jax.ShapeDtypeStruct((T, B_pad, H_PAD), jnp.float32),   # all h_t
        jax.ShapeDtypeStruct((1, B_pad, H_PAD), jnp.float32),   # c_n
    )
    return pl.pallas_call(
        _lstm_kernel,
        out_shape=out_shape,
        grid_spec=pltpu.PrefetchScalarGridSpec(
            num_scalar_prefetch=0,
            grid=(T,),
            in_specs=[
                pl.BlockSpec((1, B_pad, GCOLS), lambda t: (t, 0, 0)),  # gx streamed per step
                pl.BlockSpec(memory_space=pl.ANY),                     # W_hh^T (HBM, bf16)
            ],
            out_specs=(
                pl.BlockSpec((1, B_pad, H_PAD), lambda t: (t, 0, 0)),  # h_t per step
                pl.BlockSpec((1, B_pad, H_PAD), lambda t: (0, 0, 0)),  # c_n (final-step write)
            ),
            scratch_shapes=[
                pltpu.VMEM((H_PAD, GCOLS), jnp.bfloat16),   # resident W_hh^T (~32 MiB)
                pltpu.VMEM((B_pad, H_PAD), jnp.bfloat16),   # h carry (bf16)
                pltpu.VMEM((B_pad, H_PAD), jnp.float32),    # c carry (f32)
                pltpu.SemaphoreType.DMA((1,)),
            ],
        ),
        compiler_params=pltpu.CompilerParams(
            dimension_semantics=("arbitrary",),
            vmem_limit_bytes=48 * 1024 * 1024,   # ~33 MiB used; fits v7x's 64 MiB VMEM
        ),
    )(gx, w_hh_t)


# ----------------------------------------------------------------------------
# Host-side packing helpers.
# ----------------------------------------------------------------------------
def _pack_weight_t(w, in_pad):
    """(4*HIDDEN, in_dim) -> (in_pad, 4*H_PAD) bf16, gate-blocked columns."""
    in_dim = w.shape[1]
    w4 = w.reshape(NGATES, HIDDEN, in_dim)
    w4 = jnp.pad(w4, ((0, 0), (0, H_PAD - HIDDEN), (0, in_pad - in_dim)))
    w4 = jnp.transpose(w4, (2, 0, 1))                    # (in_pad, 4, H_PAD)
    return w4.reshape(in_pad, GCOLS).astype(jnp.bfloat16)


def _round_up(x, m):
    return ((x + m - 1) // m) * m


# ----------------------------------------------------------------------------
# Parameter init (deterministic; mirrors nn.Embedding / nn.LSTM shapes & init)
# ----------------------------------------------------------------------------
def init_params(key):
    k_emb, k1, k2, k3, k4 = jax.random.split(key, 5)
    emb = jax.random.normal(k_emb, (VOCAB, EMBED), jnp.float32)
    bound = float(1.0 / (HIDDEN ** 0.5))
    w_ih = jax.random.uniform(k1, (4 * HIDDEN, EMBED), jnp.float32, -bound, bound)
    w_hh = jax.random.uniform(k2, (4 * HIDDEN, HIDDEN), jnp.float32, -bound, bound)
    b_ih = jax.random.uniform(k3, (4 * HIDDEN,), jnp.float32, -bound, bound)
    b_hh = jax.random.uniform(k4, (4 * HIDDEN,), jnp.float32, -bound, bound)
    return emb, w_ih, w_hh, b_ih, b_hh


def lstm_network_forward(x_ids, params):
    emb, w_ih, w_hh, b_ih, b_hh = params
    T, B = x_ids.shape
    n_tok = T * B

    # Embedding gather (Pallas).  Ids are clamped (PyTorch would raise on OOB ids).
    ids = jnp.clip(x_ids.reshape(-1).astype(jnp.int32), 0, VOCAB - 1)
    n_tok_pad = _round_up(max(n_tok, TOK_BLOCK), TOK_BLOCK)
    ids_pad = jnp.pad(ids, (0, n_tok_pad - n_tok))
    x_emb = embedding_lookup(ids_pad, emb)[:n_tok]           # (n_tok, EMBED) f32

    # Hoisted input projection + bias fold (one big matmul, M = T*B rows).
    gx = x_emb @ w_ih.T + (b_ih + b_hh)                      # (n_tok, 4*HIDDEN) f32
    B_pad = _round_up(B, 8)
    gx = gx.reshape(T, B, NGATES, HIDDEN)
    gx = jnp.pad(gx, ((0, 0), (0, B_pad - B), (0, 0), (0, H_PAD - HIDDEN)))
    gx = gx.reshape(T, B_pad, GCOLS)                         # gate-packed, f32

    w_hh_t = _pack_weight_t(w_hh, H_PAD)                     # (H_PAD, 4*H_PAD) bf16

    out_p, cN_p = lstm_forward(gx, w_hh_t)

    out = out_p[:, :B, :HIDDEN]
    h_n = out_p[T - 1:T, :B, :HIDDEN]                        # h_n == last output
    c_n = cN_p[:, :B, :HIDDEN]
    return out, (h_n, c_n)


if __name__ == "__main__":
    key = jax.random.PRNGKey(0)
    pkey, xkey = jax.random.split(key)
    params = init_params(pkey)

    T, B = 8, 2
    x_ids = jax.random.randint(xkey, (T, B), 0, VOCAB, dtype=jnp.int32)

    out, (h_n, c_n) = lstm_network_forward(x_ids, params)
    jax.block_until_ready((out, h_n, c_n))

    # Pure-JAX reference for a correctness sanity check.
    emb, w_ih, w_hh, b_ih, b_hh = params
    x_emb_ref = jnp.take(emb, x_ids.reshape(-1), axis=0).reshape(T, B, EMBED)

    def step(carry, x_t):
        h, c = carry
        gates = x_t @ w_ih.T + h @ w_hh.T + b_ih + b_hh
        i, f, g, o = jnp.split(gates, 4, axis=-1)
        i = jax.nn.sigmoid(i); f = jax.nn.sigmoid(f)
        g = jnp.tanh(g); o = jax.nn.sigmoid(o)
        c = f * c + i * g
        h = o * jnp.tanh(c)
        return (h, c), h

    (h_ref, c_ref), out_ref = jax.lax.scan(
        step,
        (jnp.zeros((B, HIDDEN), jnp.float32), jnp.zeros((B, HIDDEN), jnp.float32)),
        x_emb_ref)

    assert out.shape == (T, B, HIDDEN)
    assert h_n.shape == (1, B, HIDDEN) and c_n.shape == (1, B, HIDDEN)
    assert bool(jnp.allclose(out, out_ref, atol=3e-2, rtol=3e-2)), "output mismatch"
    assert bool(jnp.allclose(h_n[0], h_ref, atol=3e-2, rtol=3e-2)), "h_n mismatch"
    assert bool(jnp.allclose(c_n[0], c_ref, atol=3e-2, rtol=3e-2)), "c_n mismatch"
    print("KERNEL_OK")
</pallas_src>

<mosaic_0001>
module attributes {stable_mosaic.version = 11 : i64} {
  func.func @_embed_kernel(%arg0: i32, %arg1: memref<128xi32, #tpu.memory_space<smem>>, %arg2: memref<50000x300xf32, #tpu.memory_space<any>>, %arg3: memref<128x300xf32, #tpu.memory_space<vmem>>, %arg4: memref<8x!tpu.dma_semaphore, #tpu.memory_space<semaphore_mem>>) attributes {dimension_semantics = [#tpu.dimension_semantics<arbitrary>], iteration_bounds = array<i64: 1>, scalar_prefetch = 1 : i64, scratch_operands = 1 : i64, tpu.core_type = #tpu.core_type<tc>, window_params = [{}, {transform_indices = @transform_1, window_bounds = array<i64: 128, 300>}]} {
    %c128_i32 = arith.constant 128 : i32
    %0 = arith.muli %arg0, %c128_i32 : i32
    %c0_i32 = arith.constant 0 : i32
    %1 = arith.addi %0, %c0_i32 : i32
    %2 = arith.index_cast %1 : i32 to index
    %3 = memref.load %arg1[%2] : memref<128xi32, #tpu.memory_space<smem>>
    %c0_i32_0 = arith.constant 0 : i32
    %c0_i32_1 = arith.constant 0 : i32
    %4 = tpu.memref_slice %arg2[%3, %c0_i32_1] : memref<50000x300xf32, #tpu.memory_space<any>> -> memref<1x300xf32, #tpu.memory_space<any>>
    %c0_i32_2 = arith.constant 0 : i32
    %c0_i32_3 = arith.constant 0 : i32
    %5 = tpu.memref_slice %arg3[%c0_i32_2, %c0_i32_3] : memref<128x300xf32, #tpu.memory_space<vmem>> -> memref<1x300xf32, #tpu.memory_space<vmem>>
    %6 = tpu.memref_slice %arg4[%c0_i32_0] : memref<8x!tpu.dma_semaphore, #tpu.memory_space<semaphore_mem>> -> memref<1x!tpu.dma_semaphore, #tpu.memory_space<semaphore_mem>>
    %7 = tpu.memref_squeeze %6 : memref<1x!tpu.dma_semaphore, #tpu.memory_space<semaphore_mem>> -> memref<!tpu.dma_semaphore, #tpu.memory_space<semaphore_mem>>
    tpu.enqueue_dma source(%4 : memref<1x300xf32, #tpu.memory_space<any>>) target(%5 : memref<1x300xf32, #tpu.memory_space<vmem>>) target_semaphore(%7 : memref<!tpu.dma_semaphore, #tpu.memory_space<semaphore_mem>>)
    %c1_i32 = arith.constant 1 : i32
    %8 = arith.addi %0, %c1_i32 : i32
    %9 = arith.index_cast %8 : i32 to index
    %10 = memref.load %arg1[%9] : memref<128xi32, #tpu.memory_space<smem>>
    %c1_i32_4 = arith.constant 1 : i32
    %c0_i32_5 = arith.constant 0 : i32
    %11 = tpu.memref_slice %arg2[%10, %c0_i32_5] : memref<50000x300xf32, #tpu.memory_space<any>> -> memref<1x300xf32, #tpu.memory_space<any>>
    %c1_i32_6 = arith.constant 1 : i32
    %c0_i32_7 = arith.constant 0 : i32
    %12 = tpu.memref_slice %arg3[%c1_i32_6, %c0_i32_7] : memref<128x300xf32, #tpu.memory_space<vmem>> -> memref<1x300xf32, #tpu.memory_space<vmem>>
    %13 = tpu.memref_slice %arg4[%c1_i32_4] : memref<8x!tpu.dma_semaphore, #tpu.memory_space<semaphore_mem>> -> memref<1x!tpu.dma_semaphore, #tpu.memory_space<semaphore_mem>>
    %14 = tpu.memref_squeeze %13 : memref<1x!tpu.dma_semaphore, #tpu.memory_space<semaphore_mem>> -> memref<!tpu.dma_semaphore, #tpu.memory_space<semaphore_mem>>
    tpu.enqueue_dma source(%11 : memref<1x300xf32, #tpu.memory_space<any>>) target(%12 : memref<1x300xf32, #tpu.memory_space<vmem>>) target_semaphore(%14 : memref<!tpu.dma_semaphore, #tpu.memory_space<semaphore_mem>>)
    %c2_i32 = arith.constant 2 : i32
    %15 = arith.addi %0, %c2_i32 : i32
    %16 = arith.index_cast %15 : i32 to index
    %17 = memref.load %arg1[%16] : memref<128xi32, #tpu.memory_space<smem>>
    %c2_i32_8 = arith.constant 2 : i32
    %c0_i32_9 = arith.constant 0 : i32
    %18 = tpu.memref_slice %arg2[%17, %c0_i32_9] : memref<50000x300xf32, #tpu.memory_space<any>> -> memref<1x300xf32, #tpu.memory_space<any>>
    %c2_i32_10 = arith.constant 2 : i32
    %c0_i32_11 = arith.constant 0 : i32
    %19 = tpu.memref_slice %arg3[%c2_i32_10, %c0_i32_11] : memref<128x300xf32, #tpu.memory_space<vmem>> -> memref<1x300xf32, #tpu.memory_space<vmem>>
    %20 = tpu.memref_slice %arg4[%c2_i32_8] : memref<8x!tpu.dma_semaphore, #tpu.memory_space<semaphore_mem>> -> memref<1x!tpu.dma_semaphore, #tpu.memory_space<semaphore_mem>>
    %21 = tpu.memref_squeeze %20 : memref<1x!tpu.dma_semaphore, #tpu.memory_space<semaphore_mem>> -> memref<!tpu.dma_semaphore, #tpu.memory_space<semaphore_mem>>
    tpu.enqueue_dma source(%18 : memref<1x300xf32, #tpu.memory_space<any>>) target(%19 : memref<1x300xf32, #tpu.memory_space<vmem>>) target_semaphore(%21 : memref<!tpu.dma_semaphore, #tpu.memory_space<semaphore_mem>>)
    %c3_i32 = arith.constant 3 : i32
    %22 = arith.addi %0, %c3_i32 : i32
    %23 = arith.index_cast %22 : i32 to index
    %24 = memref.load %arg1[%23] : memref<128xi32, #tpu.memory_space<smem>>
    %c3_i32_12 = arith.constant 3 : i32
    %c0_i32_13 = arith.constant 0 : i32
    %25 = tpu.memref_slice %arg2[%24, %c0_i32_13] : memref<50000x300xf32, #tpu.memory_space<any>> -> memref<1x300xf32, #tpu.memory_space<any>>
    %c3_i32_14 = arith.constant 3 : i32
    %c0_i32_15 = arith.constant 0 : i32
    %26 = tpu.memref_slice %arg3[%c3_i32_14, %c0_i32_15] : memref<128x300xf32, #tpu.memory_space<vmem>> -> memref<1x300xf32, #tpu.memory_space<vmem>>
    %27 = tpu.memref_slice %arg4[%c3_i32_12] : memref<8x!tpu.dma_semaphore, #tpu.memory_space<semaphore_mem>> -> memref<1x!tpu.dma_semaphore, #tpu.memory_space<semaphore_mem>>
    %28 = tpu.memref_squeeze %27 : memref<1x!tpu.dma_semaphore, #tpu.memory_space<semaphore_mem>> -> memref<!tpu.dma_semaphore, #tpu.memory_space<semaphore_mem>>
    tpu.enqueue_dma source(%25 : memref<1x300xf32, #tpu.memory_space<any>>) target(%26 : memref<1x300xf32, #tpu.memory_space<vmem>>) target_semaphore(%28 : memref<!tpu.dma_semaphore, #tpu.memory_space<semaphore_mem>>)
    %c4_i32 = arith.constant 4 : i32
    %29 = arith.addi %0, %c4_i32 : i32
    %30 = arith.index_cast %29 : i32 to index
    %31 = memref.load %arg1[%30] : memref<128xi32, #tpu.memory_space<smem>>
    %c4_i32_16 = arith.constant 4 : i32
    %c0_i32_17 = arith.constant 0 : i32
    %32 = tpu.memref_slice %arg2[%31, %c0_i32_17] : memref<50000x300xf32, #tpu.memory_space<any>> -> memref<1x300xf32, #tpu.memory_space<any>>
    %c4_i32_18 = arith.constant 4 : i32
    %c0_i32_19 = arith.constant 0 : i32
    %33 = tpu.memref_slice %arg3[%c4_i32_18, %c0_i32_19] : memref<128x300xf32, #tpu.memory_space<vmem>> -> memref<1x300xf32, #tpu.memory_space<vmem>>
    %34 = tpu.memref_slice %arg4[%c4_i32_16] : memref<8x!tpu.dma_semaphore, #tpu.memory_space<semaphore_mem>> -> memref<1x!tpu.dma_semaphore, #tpu.memory_space<semaphore_mem>>
    %35 = tpu.memref_squeeze %34 : memref<1x!tpu.dma_semaphore, #tpu.memory_space<semaphore_mem>> -> memref<!tpu.dma_semaphore, #tpu.memory_space<semaphore_mem>>
    tpu.enqueue_dma source(%32 : memref<1x300xf32, #tpu.memory_space<any>>) target(%33 : memref<1x300xf32, #tpu.memory_space<vmem>>) target_semaphore(%35 : memref<!tpu.dma_semaphore, #tpu.memory_space<semaphore_mem>>)
    %c5_i32 = arith.constant 5 : i32
    %36 = arith.addi %0, %c5_i32 : i32
    %37 = arith.index_cast %36 : i32 to index
    %38 = memref.load %arg1[%37] : memref<128xi32, #tpu.memory_space<smem>>
    %c5_i32_20 = arith.constant 5 : i32
    %c0_i32_21 = arith.constant 0 : i32
    %39 = tpu.memref_slice %arg2[%38, %c0_i32_21] : memref<50000x300xf32, #tpu.memory_space<any>> -> memref<1x300xf32, #tpu.memory_space<any>>
    %c5_i32_22 = arith.constant 5 : i32
    %c0_i32_23 = arith.constant 0 : i32
    %40 = tpu.memref_slice %arg3[%c5_i32_22, %c0_i32_23] : memref<128x300xf32, #tpu.memory_space<vmem>> -> memref<1x300xf32, #tpu.memory_space<vmem>>
    %41 = tpu.memref_slice %arg4[%c5_i32_20] : memref<8x!tpu.dma_semaphore, #tpu.memory_space<semaphore_mem>> -> memref<1x!tpu.dma_semaphore, #tpu.memory_space<semaphore_mem>>
    %42 = tpu.memref_squeeze %41 : memref<1x!tpu.dma_semaphore, #tpu.memory_space<semaphore_mem>> -> memref<!tpu.dma_semaphore, #tpu.memory_space<semaphore_mem>>
    tpu.enqueue_dma source(%39 : memref<1x300xf32, #tpu.memory_space<any>>) target(%40 : memref<1x300xf32, #tpu.memory_space<vmem>>) target_semaphore(%42 : memref<!tpu.dma_semaphore, #tpu.memory_space<semaphore_mem>>)
    %c6_i32 = arith.constant 6 : i32
    %43 = arith.addi %0, %c6_i32 : i32
    %44 = arith.index_cast %43 : i32 to index
    %45 = memref.load %arg1[%44] : memref<128xi32, #tpu.memory_space<smem>>
    %c6_i32_24 = arith.constant 6 : i32
    %c0_i32_25 = arith.constant 0 : i32
    %46 = tpu.memref_slice %arg2[%45, %c0_i32_25] : memref<50000x300xf32, #tpu.memory_space<any>> -> memref<1x300xf32, #tpu.memory_space<any>>
    %c6_i32_26 = arith.constant 6 : i32
    %c0_i32_27 = arith.constant 0 : i32
    %47 = tpu.memref_slice %arg3[%c6_i32_26, %c0_i32_27] : memref<128x300xf32, #tpu.memory_space<vmem>> -> memref<1x300xf32, #tpu.memory_space<vmem>>
    %48 = tpu.memref_slice %arg4[%c6_i32_24] : memref<8x!tpu.dma_semaphore, #tpu.memory_space<semaphore_mem>> -> memref<1x!tpu.dma_semaphore, #tpu.memory_space<semaphore_mem>>
    %49 = tpu.memref_squeeze %48 : memref<1x!tpu.dma_semaphore, #tpu.memory_space<semaphore_mem>> -> memref<!tpu.dma_semaphore, #tpu.memory_space<semaphore_mem>>
    tpu.enqueue_dma source(%46 : memref<1x300xf32, #tpu.memory_space<any>>) target(%47 : memref<1x300xf32, #tpu.memory_space<vmem>>) target_semaphore(%49 : memref<!tpu.dma_semaphore, #tpu.memory_space<semaphore_mem>>)
    %c7_i32 = arith.constant 7 : i32
    %50 = arith.addi %0, %c7_i32 : i32
    %51 = arith.index_cast %50 : i32 to index
    %52 = memref.load %arg1[%51] : memref<128xi32, #tpu.memory_space<smem>>
    %c7_i32_28 = arith.constant 7 : i32
    %c0_i32_29 = arith.constant 0 : i32
    %53 = tpu.memref_slice %arg2[%52, %c0_i32_29] : memref<50000x300xf32, #tpu.memory_space<any>> -> memref<1x300xf32, #tpu.memory_space<any>>
    %c7_i32_30 = arith.constant 7 : i32
    %c0_i32_31 = arith.constant 0 : i32
    %54 = tpu.memref_slice %arg3[%c7_i32_30, %c0_i32_31] : memref<128x300xf32, #tpu.memory_space<vmem>> -> memref<1x300xf32, #tpu.memory_space<vmem>>
    %55 = tpu.memref_slice %arg4[%c7_i32_28] : memref<8x!tpu.dma_semaphore, #tpu.memory_space<semaphore_mem>> -> memref<1x!tpu.dma_semaphore, #tpu.memory_space<semaphore_mem>>
    %56 = tpu.memref_squeeze %55 : memref<1x!tpu.dma_semaphore, #tpu.memory_space<semaphore_mem>> -> memref<!tpu.dma_semaphore, #tpu.memory_space<semaphore_mem>>
    tpu.enqueue_dma source(%53 : memref<1x300xf32, #tpu.memory_space<any>>) target(%54 : memref<1x300xf32, #tpu.memory_space<vmem>>) target_semaphore(%56 : memref<!tpu.dma_semaphore, #tpu.memory_space<semaphore_mem>>)
    %c0_i32_32 = arith.constant 0 : i32
    %c128_i32_33 = arith.constant 128 : i32
    %57 = arith.addi %c0_i32_32, %c128_i32_33 : i32
    %c1_i32_34 = arith.constant 1 : i32
    scf.for %arg5 = %c0_i32_32 to %57 step %c1_i32_34  : i32 {
      %58 = arith.addi %0, %arg5 : i32
      %59 = arith.index_cast %58 : i32 to index
      %60 = memref.load %arg1[%59] : memref<128xi32, #tpu.memory_space<smem>>
      %c8_i32 = arith.constant 8 : i32
      %c0_i32_36 = arith.constant 0 : i32
      %61 = arith.cmpi eq, %c8_i32, %c0_i32_36 : i32
      %c1_i32_37 = arith.constant 1 : i32
      %62 = arith.select %61, %c1_i32_37, %c8_i32 : i32
      %63 = arith.remsi %arg5, %62 : i32
      %c0_i32_38 = arith.constant 0 : i32
      %64 = arith.cmpi ne, %63, %c0_i32_38 : i32
      %c0_i32_39 = arith.constant 0 : i32
      %65 = arith.cmpi slt, %63, %c0_i32_39 : i32
      %c0_i32_40 = arith.constant 0 : i32
      %66 = arith.cmpi slt, %62, %c0_i32_40 : i32
      %67 = arith.xori %65, %66 : i1
      %68 = arith.andi %67, %64 : i1
      %69 = arith.addi %63, %62 : i32
      %70 = arith.select %68, %69, %63 : i32
      %c0_i32_41 = arith.constant 0 : i32
      %71 = tpu.memref_slice %arg2[%60, %c0_i32_41] : memref<50000x300xf32, #tpu.memory_space<any>> -> memref<1x300xf32, #tpu.memory_space<any>>
      %c0_i32_42 = arith.constant 0 : i32
      %72 = tpu.memref_slice %arg3[%arg5, %c0_i32_42] : memref<128x300xf32, #tpu.memory_space<vmem>> -> memref<1x300xf32, #tpu.memory_space<vmem>>
      %73 = tpu.memref_slice %arg4[%70] : memref<8x!tpu.dma_semaphore, #tpu.memory_space<semaphore_mem>> -> memref<1x!tpu.dma_semaphore, #tpu.memory_space<semaphore_mem>>
      %74 = tpu.memref_squeeze %73 : memref<1x!tpu.dma_semaphore, #tpu.memory_space<semaphore_mem>> -> memref<!tpu.dma_semaphore, #tpu.memory_space<semaphore_mem>>
      tpu.wait_dma2 semaphore(%74 : memref<!tpu.dma_semaphore, #tpu.memory_space<semaphore_mem>>) src(%71 : memref<1x300xf32, #tpu.memory_space<any>>) dst(%72 : memref<1x300xf32, #tpu.memory_space<vmem>>)
      %c8_i32_43 = arith.constant 8 : i32
      %75 = arith.addi %arg5, %c8_i32_43 : i32
      %c128_i32_44 = arith.constant 128 : i32
      %76 = arith.cmpi slt, %75, %c128_i32_44 : i32
      %77 = arith.extui %76 : i1 to i32
      %c0_i32_45 = arith.constant 0 : i32
      %78 = arith.cmpi ne, %77, %c0_i32_45 : i32
      scf.if %78 {
        %c8_i32_46 = arith.constant 8 : i32
        %79 = arith.addi %arg5, %c8_i32_46 : i32
        %80 = arith.addi %0, %79 : i32
        %81 = arith.index_cast %80 : i32 to index
        %82 = memref.load %arg1[%81] : memref<128xi32, #tpu.memory_space<smem>>
        %c8_i32_47 = arith.constant 8 : i32
        %c0_i32_48 = arith.constant 0 : i32
        %83 = arith.cmpi eq, %c8_i32_47, %c0_i32_48 : i32
        %c1_i32_49 = arith.constant 1 : i32
        %84 = arith.select %83, %c1_i32_49, %c8_i32_47 : i32
        %85 = arith.remsi %79, %84 : i32
        %c0_i32_50 = arith.constant 0 : i32
        %86 = arith.cmpi ne, %85, %c0_i32_50 : i32
        %c0_i32_51 = arith.constant 0 : i32
        %87 = arith.cmpi slt, %85, %c0_i32_51 : i32
        %c0_i32_52 = arith.constant 0 : i32
        %88 = arith.cmpi slt, %84, %c0_i32_52 : i32
        %89 = arith.xori %87, %88 : i1
        %90 = arith.andi %89, %86 : i1
        %91 = arith.addi %85, %84 : i32
        %92 = arith.select %90, %91, %85 : i32
        %c0_i32_53 = arith.constant 0 : i32
        %93 = tpu.memref_slice %arg2[%82, %c0_i32_53] : memref<50000x300xf32, #tpu.memory_space<any>> -> memref<1x300xf32, #tpu.memory_space<any>>
        %c0_i32_54 = arith.constant 0 : i32
        %94 = tpu.memref_slice %arg3[%79, %c0_i32_54] : memref<128x300xf32, #tpu.memory_space<vmem>> -> memref<1x300xf32, #tpu.memory_space<vmem>>
        %95 = tpu.memref_slice %arg4[%92] : memref<8x!tpu.dma_semaphore, #tpu.memory_space<semaphore_mem>> -> memref<1x!tpu.dma_semaphore, #tpu.memory_space<semaphore_mem>>
        %96 = tpu.memref_squeeze %95 : memref<1x!tpu.dma_semaphore, #tpu.memory_space<semaphore_mem>> -> memref<!tpu.dma_semaphore, #tpu.memory_space<semaphore_mem>>
        tpu.enqueue_dma source(%93 : memref<1x300xf32, #tpu.memory_space<any>>) target(%94 : memref<1x300xf32, #tpu.memory_space<vmem>>) target_semaphore(%96 : memref<!tpu.dma_semaphore, #tpu.memory_space<semaphore_mem>>)
      } else {
      }
    }
    %c128_i32_35 = arith.constant 128 : i32
    return
  }
  func.func @transform_1(%arg0: i32, %arg1: memref<128xi32, #tpu.memory_space<smem>>) -> (i32, i32) {
    %c0_i32 = arith.constant 0 : i32
    %c0_i32_0 = arith.constant 0 : i32
    return %arg0, %c0_i32 : i32, i32
  }
}

</mosaic_0001>

<llo_original>
// kernel: tpu_custom_call.1
$region0: #{tpu_custom_call.1}
  #allocation0 [shape = 'u32[]', space=smem, size = 0x4, offset = 0x4, fixed_abs, tag = 'smem constant byte address 0x4 - core index']
  #allocation1 [shape = 'u32[144,128]{1,0:T(1,128)}', space=vmem, size = 0x12000, scoped, tag = 'internal scratch']
  #allocation2 [shape = 's32[8]{0}', space=sflag, size = 0x20, scoped, tag = 'scratch operand']
  #allocation3 [shape = 's32[1]{0}', space=sflag, size = 0x4, scoped, tag = 'scoped memory for tpu_custom_call.1']
  #allocation4 [shape = 'u8[512]{0}', space=smem, size = 0x200, scoped, tag = 'prefetched SMEM operand 0']
  #allocation5 [shape = 's32[]', space=sflag, size = 0x4, offset = 0, fixed_abs, tag = 'sflag constant byte address 0x0 - dummy sync flag']
  #allocation6 [shape = 's32[]', space=sflag, size = 0x4, offset = 0, fixed_abs, tag = 'sflag constant byte address 0x0 - dummy sync flag']
  #allocation7 [shape = 's32[]', space=sflag, size = 0x4, offset = 0, fixed_abs, tag = 'sflag constant byte address 0x0 - dummy sync flag']
  #allocation8 [shape = 's32[]', space=sflag, size = 0x4, offset = 0, fixed_abs, tag = 'sflag constant byte address 0x0 - dummy sync flag']
  #allocation9 [shape = 's32[]', space=sflag, size = 0x4, offset = 0, fixed_abs, tag = 'sflag constant byte address 0x0 - dummy sync flag']
  #allocation10 [shape = 's32[]', space=sflag, size = 0x4, offset = 0, fixed_abs, tag = 'sflag constant byte address 0x0 - dummy sync flag']
  #allocation11 [shape = 's32[]', space=sflag, size = 0x4, offset = 0, fixed_abs, tag = 'sflag constant byte address 0x0 - dummy sync flag']
  #allocation12 [shape = 's32[]', space=sflag, size = 0x4, offset = 0, fixed_abs, tag = 'sflag constant byte address 0x0 - dummy sync flag']
  #allocation13 [shape = 's32[]', space=sflag, size = 0x4, offset = 0, fixed_abs, tag = 'sflag constant byte address 0x0 - dummy sync flag']
  %s0 = inlined_call_operand.vmem [shape: s32[128], index: 0, kind: input, shape index: {}]
  %s1 = inlined_call_operand.vmem [shape: f32[50000,300], index: 1, kind: input, shape index: {}]
  %s2 = inlined_call_operand.vmem [shape: f32[128,300], index: 2, kind: output, shape index: {}]
  %s3 = sld [smem:[#allocation0]]
  $region291: #{tpu_custom_call.1} parent=0
    _
  %s5 = ssub.s32 1, %s3
  %s6 = scalar_select 0, %s5, %s3
  %s7 = sshll.u32 %s0, 4
  %s8 = int_to_ptr.vmem [resolvable:$true] %s7
  %10 = dma.vmem_to_smem %s8, 16, [#allocation4], [#allocation3]
  %11 = dma.done [#allocation3], 16
  %12 = sfence
  %s13 = smul.u32 0, 128
  %s14 = sld [smem:[#allocation4 + %s13]]
  %s15 = sshrl.u32 %s14, 3
  %s16 = sand.u32 %s14, 7
  %s17 = smul.u32 %s15, 24
  %s18 = sadd.s32 %s16, %s17
  %s19 = scalar_lea.vmem %s1, %s18
  %p21 = scmp.lt.u32.totalorder 1, 8
  %p22 = pneg %p21
  // Predicated region
  $region2: #{tpu_custom_call.1} parent=0 // pred_check
    _
  $region3: #{tpu_custom_call.1} parent=0 // pred_check_branch
    %24 = sbr.rel (%p21) target = $region5
  $region4: #{tpu_custom_call.1} parent=0 // pred_region
    %s44 = sand.u32 1, 7
    %p45 = scmp.eq.s32.totalorder %s44, 0
    %p46 = pneg %p45
    // Predicated region
    $region17: #{tpu_custom_call.1} parent=4 // pred_check
      _
    $region18: #{tpu_custom_call.1} parent=4 // pred_check_branch
      %48 = sbr.rel (%p45) target = $region20
    $region19: #{tpu_custom_call.1} parent=4 // pred_region
      %s49 = sand.u32 1, 7
      %s50 = ssub.s32 1, %s49
      %s51 = scalar_lea.vmem %s19, %s50
      %s52 = ssub.s32 1, %s49
      %s53 = scalar_lea.vmem %s2, %s52
      %s54 = sshll.u32 1, %s49
      %s55 = ssub.s32 %s54, 1
      loop: start=0, step=1, limit=1
      $region21: #{tpu_custom_call.1} parent=19 // loop_pre_header
        _
      $region22: #{tpu_custom_call.1} parent=19 // loop_header
        %s57 = sphi 0, %s61
        %p58 = scmp.ge.s32.totalorder %s57, 1
        %s62 = sphi %s51, %s51
        %s63 = sphi %s53, %s53
      $region23: #{tpu_custom_call.1} parent=19 // loop_header_branch
        %60 = sbr.rel (%p58) target = $region27
      $region24: #{tpu_custom_call.1} parent=19 // loop_body
        %v64 = vld [vmem:[%s62] sm:%s55]
        %65 = vst [vmem:[%s63] sm:%s55] %v64
        %v66 = vld [vmem:[%s62 + $0x8] sm:%s55]
        %67 = vst [vmem:[%s63 + $0x8] sm:%s55] %v66
        %v68 = vld [vmem:[%s62 + $0x10] sm:%s55]
        %69 = vst [vmem:[%s63 + $0x10] sm:%s55] %v68
      $region25: #{tpu_custom_call.1} parent=19 // loop_footer
        %s61 = sadd.s32 1, %s57
      $region26: #{tpu_custom_call.1} parent=19 // loop_footer_branch
        %56 = sbr.rel target = $region22
      $region27: #{tpu_custom_call.1} parent=19 // loop_exit
        _
    $region20: #{tpu_custom_call.1} parent=4 // pred_fallthru
      _
  $region5: #{tpu_custom_call.1} parent=0 // pred_fallthru
    _
  // Predicated region
  $region6: #{tpu_custom_call.1} parent=0 // pred_check
    %p25 = pneg %p21
  $region7: #{tpu_custom_call.1} parent=0 // pred_check_branch
    %27 = sbr.rel (%p25) target = $region9
  $region8: #{tpu_custom_call.1} parent=0 // pred_region
    %s28 = sshll.u32 1, 1
    %s29 = ssub.s32 %s28, 1
    loop: start=0, step=1, limit=1
    $region10: #{tpu_custom_call.1} parent=8 // loop_pre_header
      _
    $region11: #{tpu_custom_call.1} parent=8 // loop_header
      %s31 = sphi 0, %s35
      %p32 = scmp.ge.s32.totalorder %s31, 1
      %s36 = sphi %s19, %s19
      %s37 = sphi %s2, %s2
    $region12: #{tpu_custom_call.1} parent=8 // loop_header_branch
      %34 = sbr.rel (%p32) target = $region16
    $region13: #{tpu_custom_call.1} parent=8 // loop_body
      %v38 = vld [vmem:[%s36] sm:%s29]
      %39 = vst [vmem:[%s37] sm:%s29] %v38
      %v40 = vld [vmem:[%s36 + $0x8] sm:%s29]
      %41 = vst [vmem:[%s37 + $0x8] sm:%s29] %v40
      %v42 = vld [vmem:[%s36 + $0x10] sm:%s29]
      %43 = vst [vmem:[%s37 + $0x10] sm:%s29] %v42
    $region14: #{tpu_custom_call.1} parent=8 // loop_footer
      %s35 = sadd.s32 1, %s31
    $region15: #{tpu_custom_call.1} parent=8 // loop_footer_branch
      %30 = sbr.rel target = $region11
    $region16: #{tpu_custom_call.1} parent=8 // loop_exit
      _
  $region9: #{tpu_custom_call.1} parent=0 // pred_fallthru
    _
  // Predicated region
  $region28: #{tpu_custom_call.1} parent=0 // pred_check
    _
  $region29: #{tpu_custom_call.1} parent=0 // pred_check_branch
    %72 = sbr.rel (0) target = $region31
  $region30: #{tpu_custom_call.1} parent=0 // pred_region
    %73 = vsyncadd [#allocation2], 48
  $region31: #{tpu_custom_call.1} parent=0 // pred_fallthru
    _
  %s74 = sadd.s32 %s13, 1
  %s75 = sld [smem:[#allocation4 + %s74]]
  %s76 = sshrl.u32 %s75, 3
  %s77 = sand.u32 %s75, 7
  %s78 = smul.u32 %s76, 24
  %s79 = sadd.s32 %s77, %s78
  %s80 = scalar_lea.vmem %s1, %s79
  %s81 = scalar_lea.vmem %s2, 1
  %s82 = scalar_lea.sflag [#allocation2], 1
  %p84 = scmp.lt.u32.totalorder 1, 8
  %p85 = pneg %p84
  // Predicated region
  $region32: #{tpu_custom_call.1} parent=0 // pred_check
    _
  $region33: #{tpu_custom_call.1} parent=0 // pred_check_branch
    %87 = sbr.rel (%p84) target = $region35
  $region34: #{tpu_custom_call.1} parent=0 // pred_region
    %s107 = sand.u32 1, 7
    %p108 = scmp.eq.s32.totalorder %s107, 0
    %p109 = pneg %p108
    // Predicated region
    $region47: #{tpu_custom_call.1} parent=34 // pred_check
      _
    $region48: #{tpu_custom_call.1} parent=34 // pred_check_branch
      %111 = sbr.rel (%p108) target = $region50
    $region49: #{tpu_custom_call.1} parent=34 // pred_region
      %s112 = sand.u32 1, 7
      %s113 = ssub.s32 1, %s112
      %s114 = scalar_lea.vmem %s80, %s113
      %s115 = ssub.s32 1, %s112
      %s116 = scalar_lea.vmem %s81, %s115
      %s117 = sshll.u32 1, %s112
      %s118 = ssub.s32 %s117, 1
      loop: start=0, step=1, limit=1
      $region51: #{tpu_custom_call.1} parent=49 // loop_pre_header
        _
      $region52: #{tpu_custom_call.1} parent=49 // loop_header
        %s120 = sphi 0, %s124
        %p121 = scmp.ge.s32.totalorder %s120, 1
        %s125 = sphi %s114, %s114
        %s126 = sphi %s116, %s116
      $region53: #{tpu_custom_call.1} parent=49 // loop_header_branch
        %123 = sbr.rel (%p121) target = $region57
      $region54: #{tpu_custom_call.1} parent=49 // loop_body
        %v127 = vld [vmem:[%s125] sm:%s118]
        %128 = vst [vmem:[%s126] sm:%s118] %v127
        %v129 = vld [vmem:[%s125 + $0x8] sm:%s118]
        %130 = vst [vmem:[%s126 + $0x8] sm:%s118] %v129
        %v131 = vld [vmem:[%s125 + $0x10] sm:%s118]
        %132 = vst [vmem:[%s126 + $0x10] sm:%s118] %v131
      $region55: #{tpu_custom_call.1} parent=49 // loop_footer
        %s124 = sadd.s32 1, %s120
      $region56: #{tpu_custom_call.1} parent=49 // loop_footer_branch
        %119 = sbr.rel target = $region52
      $region57: #{tpu_custom_call.1} parent=49 // loop_exit
        _
    $region50: #{tpu_custom_call.1} parent=34 // pred_fallthru
      _
  $region35: #{tpu_custom_call.1} parent=0 // pred_fallthru
    _
  // Predicated region
  $region36: #{tpu_custom_call.1} parent=0 // pred_check
    %p88 = pneg %p84
  $region37: #{tpu_custom_call.1} parent=0 // pred_check_branch
    %90 = sbr.rel (%p88) target = $region39
  $region38: #{tpu_custom_call.1} parent=0 // pred_region
    %s91 = sshll.u32 1, 1
    %s92 = ssub.s32 %s91, 1
    loop: start=0, step=1, limit=1
    $region40: #{tpu_custom_call.1} parent=38 // loop_pre_header
      _
    $region41: #{tpu_custom_call.1} parent=38 // loop_header
      %s94 = sphi 0, %s98
      %p95 = scmp.ge.s32.totalorder %s94, 1
      %s99 = sphi %s80, %s80
      %s100 = sphi %s81, %s81
    $region42: #{tpu_custom_call.1} parent=38 // loop_header_branch
      %97 = sbr.rel (%p95) target = $region46
    $region43: #{tpu_custom_call.1} parent=38 // loop_body
      %v101 = vld [vmem:[%s99] sm:%s92]
      %102 = vst [vmem:[%s100] sm:%s92] %v101
      %v103 = vld [vmem:[%s99 + $0x8] sm:%s92]
      %104 = vst [vmem:[%s100 + $0x8] sm:%s92] %v103
      %v105 = vld [vmem:[%s99 + $0x10] sm:%s92]
      %106 = vst [vmem:[%s100 + $0x10] sm:%s92] %v105
    $region44: #{tpu_custom_call.1} parent=38 // loop_footer
      %s98 = sadd.s32 1, %s94
    $region45: #{tpu_custom_call.1} parent=38 // loop_footer_branch
      %93 = sbr.rel target = $region41
    $region46: #{tpu_custom_call.1} parent=38 // loop_exit
      _
  $region39: #{tpu_custom_call.1} parent=0 // pred_fallthru
    _
  // Predicated region
  $region58: #{tpu_custom_call.1} parent=0 // pred_check
    _
  $region59: #{tpu_custom_call.1} parent=0 // pred_check_branch
    %135 = sbr.rel (0) target = $region61
  $region60: #{tpu_custom_call.1} parent=0 // pred_region
    %136 = vsyncadd %s82, 48
  $region61: #{tpu_custom_call.1} parent=0 // pred_fallthru
    _
  %s137 = sadd.s32 %s13, 2
  %s138 = sld [smem:[#allocation4 + %s137]]
  %s139 = sshrl.u32 %s138, 3
  %s140 = sand.u32 %s138, 7
  %s141 = smul.u32 %s139, 24
  %s142 = sadd.s32 %s140, %s141
  %s143 = scalar_lea.vmem %s1, %s142
  %s144 = scalar_lea.vmem %s2, 2
  %s145 = scalar_lea.sflag [#allocation2], 2
  %p147 = scmp.lt.u32.totalorder 1, 8
  %p148 = pneg %p147
  // Predicated region
  $region62: #{tpu_custom_call.1} parent=0 // pred_check
    _
  $region63: #{tpu_custom_call.1} parent=0 // pred_check_branch
    %150 = sbr.rel (%p147) target = $region65
  $region64: #{tpu_custom_call.1} parent=0 // pred_region
    %s170 = sand.u32 1, 7
    %p171 = scmp.eq.s32.totalorder %s170, 0
    %p172 = pneg %p171
    // Predicated region
    $region77: #{tpu_custom_call.1} parent=64 // pred_check
      _
    $region78: #{tpu_custom_call.1} parent=64 // pred_check_branch
      %174 = sbr.rel (%p171) target = $region80
    $region79: #{tpu_custom_call.1} parent=64 // pred_region
      %s175 = sand.u32 1, 7
      %s176 = ssub.s32 1, %s175
      %s177 = scalar_lea.vmem %s143, %s176
      %s178 = ssub.s32 1, %s175
      %s179 = scalar_lea.vmem %s144, %s178
      %s180 = sshll.u32 1, %s175
      %s181 = ssub.s32 %s180, 1
      loop: start=0, step=1, limit=1
      $region81: #{tpu_custom_call.1} parent=79 // loop_pre_header
        _
      $region82: #{tpu_custom_call.1} parent=79 // loop_header
        %s183 = sphi 0, %s187
        %p184 = scmp.ge.s32.totalorder %s183, 1
        %s188 = sphi %s177, %s177
        %s189 = sphi %s179, %s179
      $region83: #{tpu_custom_call.1} parent=79 // loop_header_branch
        %186 = sbr.rel (%p184) target = $region87
      $region84: #{tpu_custom_call.1} parent=79 // loop_body
        %v190 = vld [vmem:[%s188] sm:%s181]
        %191 = vst [vmem:[%s189] sm:%s181] %v190
        %v192 = vld [vmem:[%s188 + $0x8] sm:%s181]
        %193 = vst [vmem:[%s189 + $0x8] sm:%s181] %v192
        %v194 = vld [vmem:[%s188 + $0x10] sm:%s181]
        %195 = vst [vmem:[%s189 + $0x10] sm:%s181] %v194
      $region85: #{tpu_custom_call.1} parent=79 // loop_footer
        %s187 = sadd.s32 1, %s183
      $region86: #{tpu_custom_call.1} parent=79 // loop_footer_branch
        %182 = sbr.rel target = $region82
      $region87: #{tpu_custom_call.1} parent=79 // loop_exit
        _
    $region80: #{tpu_custom_call.1} parent=64 // pred_fallthru
      _
  $region65: #{tpu_custom_call.1} parent=0 // pred_fallthru
    _
  // Predicated region
  $region66: #{tpu_custom_call.1} parent=0 // pred_check
    %p151 = pneg %p147
  $region67: #{tpu_custom_call.1} parent=0 // pred_check_branch
    %153 = sbr.rel (%p151) target = $region69
  $region68: #{tpu_custom_call.1} parent=0 // pred_region
    %s154 = sshll.u32 1, 1
    %s155 = ssub.s32 %s154, 1
    loop: start=0, step=1, limit=1
    $region70: #{tpu_custom_call.1} parent=68 // loop_pre_header
      _
    $region71: #{tpu_custom_call.1} parent=68 // loop_header
      %s157 = sphi 0, %s161
      %p158 = scmp.ge.s32.totalorder %s157, 1
      %s162 = sphi %s143, %s143
      %s163 = sphi %s144, %s144
    $region72: #{tpu_custom_call.1} parent=68 // loop_header_branch
      %160 = sbr.rel (%p158) target = $region76
    $region73: #{tpu_custom_call.1} parent=68 // loop_body
      %v164 = vld [vmem:[%s162] sm:%s155]
      %165 = vst [vmem:[%s163] sm:%s155] %v164
      %v166 = vld [vmem:[%s162 + $0x8] sm:%s155]
      %167 = vst [vmem:[%s163 + $0x8] sm:%s155] %v166
      %v168 = vld [vmem:[%s162 + $0x10] sm:%s155]
      %169 = vst [vmem:[%s163 + $0x10] sm:%s155] %v168
    $region74: #{tpu_custom_call.1} parent=68 // loop_footer
      %s161 = sadd.s32 1, %s157
    $region75: #{tpu_custom_call.1} parent=68 // loop_footer_branch
      %156 = sbr.rel target = $region71
    $region76: #{tpu_custom_call.1} parent=68 // loop_exit
      _
  $region69: #{tpu_custom_call.1} parent=0 // pred_fallthru
    _
  // Predicated region
  $region88: #{tpu_custom_call.1} parent=0 // pred_check
    _
  $region89: #{tpu_custom_call.1} parent=0 // pred_check_branch
    %198 = sbr.rel (0) target = $region91
  $region90: #{tpu_custom_call.1} parent=0 // pred_region
    %199 = vsyncadd %s145, 48
  $region91: #{tpu_custom_call.1} parent=0 // pred_fallthru
    _
  %s200 = sadd.s32 %s13, 3
  %s201 = sld [smem:[#allocation4 + %s200]]
  %s202 = sshrl.u32 %s201, 3
  %s203 = sand.u32 %s201, 7
  %s204 = smul.u32 %s202, 24
  %s205 = sadd.s32 %s203, %s204
  %s206 = scalar_lea.vmem %s1, %s205
  %s207 = scalar_lea.vmem %s2, 3
  %s208 = scalar_lea.sflag [#allocation2], 3
  %p210 = scmp.lt.u32.totalorder 1, 8
  %p211 = pneg %p210
  // Predicated region
  $region92: #{tpu_custom_call.1} parent=0 // pred_check
    _
  $region93: #{tpu_custom_call.1} parent=0 // pred_check_branch
    %213 = sbr.rel (%p210) target = $region95
  $region94: #{tpu_custom_call.1} parent=0 // pred_region
    %s233 = sand.u32 1, 7
    %p234 = scmp.eq.s32.totalorder %s233, 0
    %p235 = pneg %p234
    // Predicated region
    $region107: #{tpu_custom_call.1} parent=94 // pred_check
      _
    $region108: #{tpu_custom_call.1} parent=94 // pred_check_branch
      %237 = sbr.rel (%p234) target = $region110
    $region109: #{tpu_custom_call.1} parent=94 // pred_region
      %s238 = sand.u32 1, 7
      %s239 = ssub.s32 1, %s238
      %s240 = scalar_lea.vmem %s206, %s239
      %s241 = ssub.s32 1, %s238
      %s242 = scalar_lea.vmem %s207, %s241
      %s243 = sshll.u32 1, %s238
      %s244 = ssub.s32 %s243, 1
      loop: start=0, step=1, limit=1
      $region111: #{tpu_custom_call.1} parent=109 // loop_pre_header
        _
      $region112: #{tpu_custom_call.1} parent=109 // loop_header
        %s246 = sphi 0, %s250
        %p247 = scmp.ge.s32.totalorder %s246, 1
        %s251 = sphi %s240, %s240
        %s252 = sphi %s242, %s242
      $region113: #{tpu_custom_call.1} parent=109 // loop_header_branch
        %249 = sbr.rel (%p247) target = $region117
      $region114: #{tpu_custom_call.1} parent=109 // loop_body
        %v253 = vld [vmem:[%s251] sm:%s244]
        %254 = vst [vmem:[%s252] sm:%s244] %v253
        %v255 = vld [vmem:[%s251 + $0x8] sm:%s244]
        %256 = vst [vmem:[%s252 + $0x8] sm:%s244] %v255
        %v257 = vld [vmem:[%s251 + $0x10] sm:%s244]
        %258 = vst [vmem:[%s252 + $0x10] sm:%s244] %v257
      $region115: #{tpu_custom_call.1} parent=109 // loop_footer
        %s250 = sadd.s32 1, %s246
      $region116: #{tpu_custom_call.1} parent=109 // loop_footer_branch
        %245 = sbr.rel target = $region112
      $region117: #{tpu_custom_call.1} parent=109 // loop_exit
        _
    $region110: #{tpu_custom_call.1} parent=94 // pred_fallthru
      _
  $region95: #{tpu_custom_call.1} parent=0 // pred_fallthru
    _
  // Predicated region
  $region96: #{tpu_custom_call.1} parent=0 // pred_check
    %p214 = pneg %p210
  $region97: #{tpu_custom_call.1} parent=0 // pred_check_branch
    %216 = sbr.rel (%p214) target = $region99
  $region98: #{tpu_custom_call.1} parent=0 // pred_region
    %s217 = sshll.u32 1, 1
    %s218 = ssub.s32 %s217, 1
    loop: start=0, step=1, limit=1
    $region100: #{tpu_custom_call.1} parent=98 // loop_pre_header
      _
    $region101: #{tpu_custom_call.1} parent=98 // loop_header
      %s220 = sphi 0, %s224
      %p221 = scmp.ge.s32.totalorder %s220, 1
      %s225 = sphi %s206, %s206
      %s226 = sphi %s207, %s207
    $region102: #{tpu_custom_call.1} parent=98 // loop_header_branch
      %223 = sbr.rel (%p221) target = $region106
    $region103: #{tpu_custom_call.1} parent=98 // loop_body
      %v227 = vld [vmem:[%s225] sm:%s218]
      %228 = vst [vmem:[%s226] sm:%s218] %v227
      %v229 = vld [vmem:[%s225 + $0x8] sm:%s218]
      %230 = vst [vmem:[%s226 + $0x8] sm:%s218] %v229
      %v231 = vld [vmem:[%s225 + $0x10] sm:%s218]
      %232 = vst [vmem:[%s226 + $0x10] sm:%s218] %v231
    $region104: #{tpu_custom_call.1} parent=98 // loop_footer
      %s224 = sadd.s32 1, %s220
    $region105: #{tpu_custom_call.1} parent=98 // loop_footer_branch
      %219 = sbr.rel target = $region101
    $region106: #{tpu_custom_call.1} parent=98 // loop_exit
      _
  $region99: #{tpu_custom_call.1} parent=0 // pred_fallthru
    _
  // Predicated region
  $region118: #{tpu_custom_call.1} parent=0 // pred_check
    _
  $region119: #{tpu_custom_call.1} parent=0 // pred_check_branch
    %261 = sbr.rel (0) target = $region121
  $region120: #{tpu_custom_call.1} parent=0 // pred_region
    %262 = vsyncadd %s208, 48
  $region121: #{tpu_custom_call.1} parent=0 // pred_fallthru
    _
  %s263 = sadd.s32 %s13, 4
  %s264 = sld [smem:[#allocation4 + %s263]]
  %s265 = sshrl.u32 %s264, 3
  %s266 = sand.u32 %s264, 7
  %s267 = smul.u32 %s265, 24
  %s268 = sadd.s32 %s266, %s267
  %s269 = scalar_lea.vmem %s1, %s268
  %s270 = scalar_lea.vmem %s2, 4
  %s271 = scalar_lea.sflag [#allocation2], 4
  %p273 = scmp.lt.u32.totalorder 1, 8
  %p274 = pneg %p273
  // Predicated region
  $region122: #{tpu_custom_call.1} parent=0 // pred_check
    _
  $region123: #{tpu_custom_call.1} parent=0 // pred_check_branch
    %276 = sbr.rel (%p273) target = $region125
  $region124: #{tpu_custom_call.1} parent=0 // pred_region
    %s296 = sand.u32 1, 7
    %p297 = scmp.eq.s32.totalorder %s296, 0
    %p298 = pneg %p297
    // Predicated region
    $region137: #{tpu_custom_call.1} parent=124 // pred_check
      _
    $region138: #{tpu_custom_call.1} parent=124 // pred_check_branch
      %300 = sbr.rel (%p297) target = $region140
    $region139: #{tpu_custom_call.1} parent=124 // pred_region
      %s301 = sand.u32 1, 7
      %s302 = ssub.s32 1, %s301
      %s303 = scalar_lea.vmem %s269, %s302
      %s304 = ssub.s32 1, %s301
      %s305 = scalar_lea.vmem %s270, %s304
      %s306 = sshll.u32 1, %s301
      %s307 = ssub.s32 %s306, 1
      loop: start=0, step=1, limit=1
      $region141: #{tpu_custom_call.1} parent=139 // loop_pre_header
        _
      $region142: #{tpu_custom_call.1} parent=139 // loop_header
        %s309 = sphi 0, %s313
        %p310 = scmp.ge.s32.totalorder %s309, 1
        %s314 = sphi %s303, %s303
        %s315 = sphi %s305, %s305
      $region143: #{tpu_custom_call.1} parent=139 // loop_header_branch
        %312 = sbr.rel (%p310) target = $region147
      $region144: #{tpu_custom_call.1} parent=139 // loop_body
        %v316 = vld [vmem:[%s314] sm:%s307]
        %317 = vst [vmem:[%s315] sm:%s307] %v316
        %v318 = vld [vmem:[%s314 + $0x8] sm:%s307]
        %319 = vst [vmem:[%s315 + $0x8] sm:%s307] %v318
        %v320 = vld [vmem:[%s314 + $0x10] sm:%s307]
        %321 = vst [vmem:[%s315 + $0x10] sm:%s307] %v320
      $region145: #{tpu_custom_call.1} parent=139 // loop_footer
        %s313 = sadd.s32 1, %s309
      $region146: #{tpu_custom_call.1} parent=139 // loop_footer_branch
        %308 = sbr.rel target = $region142
      $region147: #{tpu_custom_call.1} parent=139 // loop_exit
        _
    $region140: #{tpu_custom_call.1} parent=124 // pred_fallthru
      _
  $region125: #{tpu_custom_call.1} parent=0 // pred_fallthru
    _
  // Predicated region
  $region126: #{tpu_custom_call.1} parent=0 // pred_check
    %p277 = pneg %p273
  $region127: #{tpu_custom_call.1} parent=0 // pred_check_branch
    %279 = sbr.rel (%p277) target = $region129
  $region128: #{tpu_custom_call.1} parent=0 // pred_region
    %s280 = sshll.u32 1, 1
    %s281 = ssub.s32 %s280, 1
    loop: start=0, step=1, limit=1
    $region130: #{tpu_custom_call.1} parent=128 // loop_pre_header
      _
    $region131: #{tpu_custom_call.1} parent=128 // loop_header
      %s283 = sphi 0, %s287
      %p284 = scmp.ge.s32.totalorder %s283, 1
      %s288 = sphi %s269, %s269
      %s289 = sphi %s270, %s270
    $region132: #{tpu_custom_call.1} parent=128 // loop_header_branch
      %286 = sbr.rel (%p284) target = $region136
    $region133: #{tpu_custom_call.1} parent=128 // loop_body
      %v290 = vld [vmem:[%s288] sm:%s281]
      %291 = vst [vmem:[%s289] sm:%s281] %v290
      %v292 = vld [vmem:[%s288 + $0x8] sm:%s281]
      %293 = vst [vmem:[%s289 + $0x8] sm:%s281] %v292
      %v294 = vld [vmem:[%s288 + $0x10] sm:%s281]
      %295 = vst [vmem:[%s289 + $0x10] sm:%s281] %v294
    $region134: #{tpu_custom_call.1} parent=128 // loop_footer
      %s287 = sadd.s32 1, %s283
    $region135: #{tpu_custom_call.1} parent=128 // loop_footer_branch
      %282 = sbr.rel target = $region131
    $region136: #{tpu_custom_call.1} parent=128 // loop_exit
      _
  $region129: #{tpu_custom_call.1} parent=0 // pred_fallthru
    _
  // Predicated region
  $region148: #{tpu_custom_call.1} parent=0 // pred_check
    _
  $region149: #{tpu_custom_call.1} parent=0 // pred_check_branch
    %324 = sbr.rel (0) target = $region151
  $region150: #{tpu_custom_call.1} parent=0 // pred_region
    %325 = vsyncadd %s271, 48
  $region151: #{tpu_custom_call.1} parent=0 // pred_fallthru
    _
  %s326 = sadd.s32 %s13, 5
  %s327 = sld [smem:[#allocation4 + %s326]]
  %s328 = sshrl.u32 %s327, 3
  %s329 = sand.u32 %s327, 7
  %s330 = smul.u32 %s328, 24
  %s331 = sadd.s32 %s329, %s330
  %s332 = scalar_lea.vmem %s1, %s331
  %s333 = scalar_lea.vmem %s2, 5
  %s334 = scalar_lea.sflag [#allocation2], 5
  %p336 = scmp.lt.u32.totalorder 1, 8
  %p337 = pneg %p336
  // Predicated region
  $region152: #{tpu_custom_call.1} parent=0 // pred_check
    _
  $region153: #{tpu_custom_call.1} parent=0 // pred_check_branch
    %339 = sbr.rel (%p336) target = $region155
  $region154: #{tpu_custom_call.1} parent=0 // pred_region
    %s359 = sand.u32 1, 7
    %p360 = scmp.eq.s32.totalorder %s359, 0
    %p361 = pneg %p360
    // Predicated region
    $region167: #{tpu_custom_call.1} parent=154 // pred_check
      _
    $region168: #{tpu_custom_call.1} parent=154 // pred_check_branch
      %363 = sbr.rel (%p360) target = $region170
    $region169: #{tpu_custom_call.1} parent=154 // pred_region
      %s364 = sand.u32 1, 7
      %s365 = ssub.s32 1, %s364
      %s366 = scalar_lea.vmem %s332, %s365
      %s367 = ssub.s32 1, %s364
      %s368 = scalar_lea.vmem %s333, %s367
      %s369 = sshll.u32 1, %s364
      %s370 = ssub.s32 %s369, 1
      loop: start=0, step=1, limit=1
      $region171: #{tpu_custom_call.1} parent=169 // loop_pre_header
        _
      $region172: #{tpu_custom_call.1} parent=169 // loop_header
        %s372 = sphi 0, %s376
        %p373 = scmp.ge.s32.totalorder %s372, 1
        %s377 = sphi %s366, %s366
        %s378 = sphi %s368, %s368
      $region173: #{tpu_custom_call.1} parent=169 // loop_header_branch
        %375 = sbr.rel (%p373) target = $region177
      $region174: #{tpu_custom_call.1} parent=169 // loop_body
        %v379 = vld [vmem:[%s377] sm:%s370]
        %380 = vst [vmem:[%s378] sm:%s370] %v379
        %v381 = vld [vmem:[%s377 + $0x8] sm:%s370]
        %382 = vst [vmem:[%s378 + $0x8] sm:%s370] %v381
        %v383 = vld [vmem:[%s377 + $0x10] sm:%s370]
        %384 = vst [vmem:[%s378 + $0x10] sm:%s370] %v383
      $region175: #{tpu_custom_call.1} parent=169 // loop_footer
        %s376 = sadd.s32 1, %s372
      $region176: #{tpu_custom_call.1} parent=169 // loop_footer_branch
        %371 = sbr.rel target = $region172
      $region177: #{tpu_custom_call.1} parent=169 // loop_exit
        _
    $region170: #{tpu_custom_call.1} parent=154 // pred_fallthru
      _
  $region155: #{tpu_custom_call.1} parent=0 // pred_fallthru
    _
  // Predicated region
  $region156: #{tpu_custom_call.1} parent=0 // pred_check
    %p340 = pneg %p336
  $region157: #{tpu_custom_call.1} parent=0 // pred_check_branch
    %342 = sbr.rel (%p340) target = $region159
  $region158: #{tpu_custom_call.1} parent=0 // pred_region
    %s343 = sshll.u32 1, 1
    %s344 = ssub.s32 %s343, 1
    loop: start=0, step=1, limit=1
    $region160: #{tpu_custom_call.1} parent=158 // loop_pre_header
      _
    $region161: #{tpu_custom_call.1} parent=158 // loop_header
      %s346 = sphi 0, %s350
      %p347 = scmp.ge.s32.totalorder %s346, 1
      %s351 = sphi %s332, %s332
      %s352 = sphi %s333, %s333
    $region162: #{tpu_custom_call.1} parent=158 // loop_header_branch
      %349 = sbr.rel (%p347) target = $region166
    $region163: #{tpu_custom_call.1} parent=158 // loop_body
      %v353 = vld [vmem:[%s351] sm:%s344]
      %354 = vst [vmem:[%s352] sm:%s344] %v353
      %v355 = vld [vmem:[%s351 + $0x8] sm:%s344]
      %356 = vst [vmem:[%s352 + $0x8] sm:%s344] %v355
      %v357 = vld [vmem:[%s351 + $0x10] sm:%s344]
      %358 = vst [vmem:[%s352 + $0x10] sm:%s344] %v357
    $region164: #{tpu_custom_call.1} parent=158 // loop_footer
      %s350 = sadd.s32 1, %s346
    $region165: #{tpu_custom_call.1} parent=158 // loop_footer_branch
      %345 = sbr.rel target = $region161
    $region166: #{tpu_custom_call.1} parent=158 // loop_exit
      _
  $region159: #{tpu_custom_call.1} parent=0 // pred_fallthru
    _
  // Predicated region
  $region178: #{tpu_custom_call.1} parent=0 // pred_check
    _
  $region179: #{tpu_custom_call.1} parent=0 // pred_check_branch
    %387 = sbr.rel (0) target = $region181
  $region180: #{tpu_custom_call.1} parent=0 // pred_region
    %388 = vsyncadd %s334, 48
  $region181: #{tpu_custom_call.1} parent=0 // pred_fallthru
    _
  %s389 = sadd.s32 %s13, 6
  %s390 = sld [smem:[#allocation4 + %s389]]
  %s391 = sshrl.u32 %s390, 3
  %s392 = sand.u32 %s390, 7
  %s393 = smul.u32 %s391, 24
  %s394 = sadd.s32 %s392, %s393
  %s395 = scalar_lea.vmem %s1, %s394
  %s396 = scalar_lea.vmem %s2, 6
  %s397 = scalar_lea.sflag [#allocation2], 6
  %p399 = scmp.lt.u32.totalorder 1, 8
  %p400 = pneg %p399
  // Predicated region
  $region182: #{tpu_custom_call.1} parent=0 // pred_check
    _
  $region183: #{tpu_custom_call.1} parent=0 // pred_check_branch
    %402 = sbr.rel (%p399) target = $region185
  $region184: #{tpu_custom_call.1} parent=0 // pred_region
    %s422 = sand.u32 1, 7
    %p423 = scmp.eq.s32.totalorder %s422, 0
    %p424 = pneg %p423
    // Predicated region
    $region197: #{tpu_custom_call.1} parent=184 // pred_check
      _
    $region198: #{tpu_custom_call.1} parent=184 // pred_check_branch
      %426 = sbr.rel (%p423) target = $region200
    $region199: #{tpu_custom_call.1} parent=184 // pred_region
      %s427 = sand.u32 1, 7
      %s428 = ssub.s32 1, %s427
      %s429 = scalar_lea.vmem %s395, %s428
      %s430 = ssub.s32 1, %s427
      %s431 = scalar_lea.vmem %s396, %s430
      %s432 = sshll.u32 1, %s427
      %s433 = ssub.s32 %s432, 1
      loop: start=0, step=1, limit=1
      $region201: #{tpu_custom_call.1} parent=199 // loop_pre_header
        _
      $region202: #{tpu_custom_call.1} parent=199 // loop_header
        %s435 = sphi 0, %s439
        %p436 = scmp.ge.s32.totalorder %s435, 1
        %s440 = sphi %s429, %s429
        %s441 = sphi %s431, %s431
      $region203: #{tpu_custom_call.1} parent=199 // loop_header_branch
        %438 = sbr.rel (%p436) target = $region207
      $region204: #{tpu_custom_call.1} parent=199 // loop_body
        %v442 = vld [vmem:[%s440] sm:%s433]
        %443 = vst [vmem:[%s441] sm:%s433] %v442
        %v444 = vld [vmem:[%s440 + $0x8] sm:%s433]
        %445 = vst [vmem:[%s441 + $0x8] sm:%s433] %v444
        %v446 = vld [vmem:[%s440 + $0x10] sm:%s433]
        %447 = vst [vmem:[%s441 + $0x10] sm:%s433] %v446
      $region205: #{tpu_custom_call.1} parent=199 // loop_footer
        %s439 = sadd.s32 1, %s435
      $region206: #{tpu_custom_call.1} parent=199 // loop_footer_branch
        %434 = sbr.rel target = $region202
      $region207: #{tpu_custom_call.1} parent=199 // loop_exit
        _
    $region200: #{tpu_custom_call.1} parent=184 // pred_fallthru
      _
  $region185: #{tpu_custom_call.1} parent=0 // pred_fallthru
    _
  // Predicated region
  $region186: #{tpu_custom_call.1} parent=0 // pred_check
    %p403 = pneg %p399
  $region187: #{tpu_custom_call.1} parent=0 // pred_check_branch
    %405 = sbr.rel (%p403) target = $region189
  $region188: #{tpu_custom_call.1} parent=0 // pred_region
    %s406 = sshll.u32 1, 1
    %s407 = ssub.s32 %s406, 1
    loop: start=0, step=1, limit=1
    $region190: #{tpu_custom_call.1} parent=188 // loop_pre_header
      _
    $region191: #{tpu_custom_call.1} parent=188 // loop_header
      %s409 = sphi 0, %s413
      %p410 = scmp.ge.s32.totalorder %s409, 1
      %s414 = sphi %s395, %s395
      %s415 = sphi %s396, %s396
    $region192: #{tpu_custom_call.1} parent=188 // loop_header_branch
      %412 = sbr.rel (%p410) target = $region196
    $region193: #{tpu_custom_call.1} parent=188 // loop_body
      %v416 = vld [vmem:[%s414] sm:%s407]
      %417 = vst [vmem:[%s415] sm:%s407] %v416
      %v418 = vld [vmem:[%s414 + $0x8] sm:%s407]
      %419 = vst [vmem:[%s415 + $0x8] sm:%s407] %v418
      %v420 = vld [vmem:[%s414 + $0x10] sm:%s407]
      %421 = vst [vmem:[%s415 + $0x10] sm:%s407] %v420
    $region194: #{tpu_custom_call.1} parent=188 // loop_footer
      %s413 = sadd.s32 1, %s409
    $region195: #{tpu_custom_call.1} parent=188 // loop_footer_branch
      %408 = sbr.rel target = $region191
    $region196: #{tpu_custom_call.1} parent=188 // loop_exit
      _
  $region189: #{tpu_custom_call.1} parent=0 // pred_fallthru
    _
  // Predicated region
  $region208: #{tpu_custom_call.1} parent=0 // pred_check
    _
  $region209: #{tpu_custom_call.1} parent=0 // pred_check_branch
    %450 = sbr.rel (0) target = $region211
  $region210: #{tpu_custom_call.1} parent=0 // pred_region
    %451 = vsyncadd %s397, 48
  $region211: #{tpu_custom_call.1} parent=0 // pred_fallthru
    _
  %s452 = sadd.s32 %s13, 7
  %s453 = sld [smem:[#allocation4 + %s452]]
  %s454 = sshrl.u32 %s453, 3
  %s455 = sand.u32 %s453, 7
  %s456 = smul.u32 %s454, 24
  %s457 = sadd.s32 %s455, %s456
  %s458 = scalar_lea.vmem %s1, %s457
  %s459 = scalar_lea.vmem %s2, 7
  %s460 = scalar_lea.sflag [#allocation2], 7
  %p462 = scmp.lt.u32.totalorder 1, 8
  %p463 = pneg %p462
  // Predicated region
  $region212: #{tpu_custom_call.1} parent=0 // pred_check
    _
  $region213: #{tpu_custom_call.1} parent=0 // pred_check_branch
    %465 = sbr.rel (%p462) target = $region215
  $region214: #{tpu_custom_call.1} parent=0 // pred_region
    %s485 = sand.u32 1, 7
    %p486 = scmp.eq.s32.totalorder %s485, 0
    %p487 = pneg %p486
    // Predicated region
    $region227: #{tpu_custom_call.1} parent=214 // pred_check
      _
    $region228: #{tpu_custom_call.1} parent=214 // pred_check_branch
      %489 = sbr.rel (%p486) target = $region230
    $region229: #{tpu_custom_call.1} parent=214 // pred_region
      %s490 = sand.u32 1, 7
      %s491 = ssub.s32 1, %s490
      %s492 = scalar_lea.vmem %s458, %s491
      %s493 = ssub.s32 1, %s490
      %s494 = scalar_lea.vmem %s459, %s493
      %s495 = sshll.u32 1, %s490
      %s496 = ssub.s32 %s495, 1
      loop: start=0, step=1, limit=1
      $region231: #{tpu_custom_call.1} parent=229 // loop_pre_header
        _
      $region232: #{tpu_custom_call.1} parent=229 // loop_header
        %s498 = sphi 0, %s502
        %p499 = scmp.ge.s32.totalorder %s498, 1
        %s503 = sphi %s492, %s492
        %s504 = sphi %s494, %s494
      $region233: #{tpu_custom_call.1} parent=229 // loop_header_branch
        %501 = sbr.rel (%p499) target = $region237
      $region234: #{tpu_custom_call.1} parent=229 // loop_body
        %v505 = vld [vmem:[%s503] sm:%s496]
        %506 = vst [vmem:[%s504] sm:%s496] %v505
        %v507 = vld [vmem:[%s503 + $0x8] sm:%s496]
        %508 = vst [vmem:[%s504 + $0x8] sm:%s496] %v507
        %v509 = vld [vmem:[%s503 + $0x10] sm:%s496]
        %510 = vst [vmem:[%s504 + $0x10] sm:%s496] %v509
      $region235: #{tpu_custom_call.1} parent=229 // loop_footer
        %s502 = sadd.s32 1, %s498
      $region236: #{tpu_custom_call.1} parent=229 // loop_footer_branch
        %497 = sbr.rel target = $region232
      $region237: #{tpu_custom_call.1} parent=229 // loop_exit
        _
    $region230: #{tpu_custom_call.1} parent=214 // pred_fallthru
      _
  $region215: #{tpu_custom_call.1} parent=0 // pred_fallthru
    _
  // Predicated region
  $region216: #{tpu_custom_call.1} parent=0 // pred_check
    %p466 = pneg %p462
  $region217: #{tpu_custom_call.1} parent=0 // pred_check_branch
    %468 = sbr.rel (%p466) target = $region219
  $region218: #{tpu_custom_call.1} parent=0 // pred_region
    %s469 = sshll.u32 1, 1
    %s470 = ssub.s32 %s469, 1
    loop: start=0, step=1, limit=1
    $region220: #{tpu_custom_call.1} parent=218 // loop_pre_header
      _
    $region221: #{tpu_custom_call.1} parent=218 // loop_header
      %s472 = sphi 0, %s476
      %p473 = scmp.ge.s32.totalorder %s472, 1
      %s477 = sphi %s458, %s458
      %s478 = sphi %s459, %s459
    $region222: #{tpu_custom_call.1} parent=218 // loop_header_branch
      %475 = sbr.rel (%p473) target = $region226
    $region223: #{tpu_custom_call.1} parent=218 // loop_body
      %v479 = vld [vmem:[%s477] sm:%s470]
      %480 = vst [vmem:[%s478] sm:%s470] %v479
      %v481 = vld [vmem:[%s477 + $0x8] sm:%s470]
      %482 = vst [vmem:[%s478 + $0x8] sm:%s470] %v481
      %v483 = vld [vmem:[%s477 + $0x10] sm:%s470]
      %484 = vst [vmem:[%s478 + $0x10] sm:%s470] %v483
    $region224: #{tpu_custom_call.1} parent=218 // loop_footer
      %s476 = sadd.s32 1, %s472
    $region225: #{tpu_custom_call.1} parent=218 // loop_footer_branch
      %471 = sbr.rel target = $region221
    $region226: #{tpu_custom_call.1} parent=218 // loop_exit
      _
  $region219: #{tpu_custom_call.1} parent=0 // pred_fallthru
    _
  // Predicated region
  $region238: #{tpu_custom_call.1} parent=0 // pred_check
    _
  $region239: #{tpu_custom_call.1} parent=0 // pred_check_branch
    %513 = sbr.rel (0) target = $region241
  $region240: #{tpu_custom_call.1} parent=0 // pred_region
    %514 = vsyncadd %s460, 48
  $region241: #{tpu_custom_call.1} parent=0 // pred_fallthru
    _
  loop: start=0, step=1, limit=128
  $region242: #{tpu_custom_call.1} parent=0 // loop_pre_header
    _
  $region243: #{tpu_custom_call.1} parent=0 // loop_header
    %s516 = sphi 0, %s520
    %p517 = scmp.ge.s32.totalorder %s516, 128
  $region244: #{tpu_custom_call.1} parent=0 // loop_header_branch
    %519 = sbr.rel (%p517) target = $region248
  $region245: #{tpu_custom_call.1} parent=0 // loop_body
    %s521 = sadd.s32 %s13, %s516
    %s522 = sld [smem:[#allocation4 + %s521]]
    %p523 = scmp.lt.s32.totalorder %s516, 0
    %s524 = ssub.s32 0, %s516
    %s525 = scalar_select %p523, %s524, %s516
    %s526 = sand.u32 %s525, 7
    %s527 = ssub.s32 0, %s526
    %s528 = scalar_select %p523, %s527, %s526
    %p529 = scmp.ne.s32.totalorder %s528, 0
    %p530 = scmp.lt.s32.totalorder %s528, 0
    %p531 = pnand %p530, %p529
    %p532 = pneg %p531
    %s533 = sadd.s32 %s528, 8
    %s534 = scalar_select %p532, %s533, %s528
    %s535 = scalar_lea.sflag [#allocation2], %s534
    %s536 = smul.u32 1, 3
    %s537 = sshll.u32 %s536, 4
    %538 = dma.done %s535, %s537
    %s539 = sadd.s32 %s516, 8
    %p540 = scmp.lt.s32.totalorder %s539, 128
    // Predicated region
    $region249: #{tpu_custom_call.1} parent=245 // pred_check
      %p541 = pneg %p540
    $region250: #{tpu_custom_call.1} parent=245 // pred_check_branch
      %543 = sbr.rel (%p541) target = $region252
    $region251: #{tpu_custom_call.1} parent=245 // pred_region
      %s544 = sadd.s32 %s13, %s539
      %s545 = sld [smem:[#allocation4 + %s544]]
      %p546 = scmp.lt.s32.totalorder %s539, 0
      %s547 = ssub.s32 0, %s539
      %s548 = scalar_select %p546, %s547, %s539
      %s549 = sand.u32 %s548, 7
      %s550 = ssub.s32 0, %s549
      %s551 = scalar_select %p546, %s550, %s549
      %p552 = scmp.ne.s32.totalorder %s551, 0
      %p553 = scmp.lt.s32.totalorder %s551, 0
      %p554 = pnand %p553, %p552
      %p555 = pneg %p554
      %s556 = sadd.s32 %s551, 8
      %s557 = scalar_select %p555, %s556, %s551
      %s558 = sshrl.u32 %s545, 3
      %s559 = sand.u32 %s545, 7
      %s560 = smul.u32 %s558, 24
      %s561 = sadd.s32 %s559, %s560
      %s562 = scalar_lea.vmem %s1, %s561
      %s563 = sshrl.u32 %s539, 3
      %s564 = sand.u32 %s539, 7
      %s565 = smul.u32 %s563, 24
      %s566 = sadd.s32 %s564, %s565
      %s567 = scalar_lea.vmem %s2, %s566
      %s568 = scalar_lea.sflag [#allocation2], %s557
      %p570 = scmp.lt.u32.totalorder 1, 8
      %p571 = pneg %p570
      // Predicated region
      $region253: #{tpu_custom_call.1} parent=251 // pred_check
        _
      $region254: #{tpu_custom_call.1} parent=251 // pred_check_branch
        %573 = sbr.rel (%p570) target = $region256
      $region255: #{tpu_custom_call.1} parent=251 // pred_region
        %s593 = sand.u32 1, 7
        %p594 = scmp.eq.s32.totalorder %s593, 0
        %p595 = pneg %p594
        // Predicated region
        $region268: #{tpu_custom_call.1} parent=255 // pred_check
          _
        $region269: #{tpu_custom_call.1} parent=255 // pred_check_branch
          %597 = sbr.rel (%p594) target = $region271
        $region270: #{tpu_custom_call.1} parent=255 // pred_region
          %s598 = sand.u32 1, 7
          %s599 = ssub.s32 1, %s598
          %s600 = scalar_lea.vmem %s562, %s599
          %s601 = ssub.s32 1, %s598
          %s602 = scalar_lea.vmem %s567, %s601
          %s603 = sshll.u32 1, %s598
          %s604 = ssub.s32 %s603, 1
          loop: start=0, step=1, limit=1
          $region272: #{tpu_custom_call.1} parent=270 // loop_pre_header
            _
          $region273: #{tpu_custom_call.1} parent=270 // loop_header
            %s606 = sphi 0, %s610
            %p607 = scmp.ge.s32.totalorder %s606, 1
            %s611 = sphi %s600, %s600
            %s612 = sphi %s602, %s602
          $region274: #{tpu_custom_call.1} parent=270 // loop_header_branch
            %609 = sbr.rel (%p607) target = $region278
          $region275: #{tpu_custom_call.1} parent=270 // loop_body
            %v613 = vld [vmem:[%s611] sm:%s604]
            %614 = vst [vmem:[%s612] sm:%s604] %v613
            %v615 = vld [vmem:[%s611 + $0x8] sm:%s604]
            %616 = vst [vmem:[%s612 + $0x8] sm:%s604] %v615
            %v617 = vld [vmem:[%s611 + $0x10] sm:%s604]
            %618 = vst [vmem:[%s612 + $0x10] sm:%s604] %v617
          $region276: #{tpu_custom_call.1} parent=270 // loop_footer
            %s610 = sadd.s32 1, %s606
          $region277: #{tpu_custom_call.1} parent=270 // loop_footer_branch
            %605 = sbr.rel target = $region273
          $region278: #{tpu_custom_call.1} parent=270 // loop_exit
            _
        $region271: #{tpu_custom_call.1} parent=255 // pred_fallthru
          _
      $region256: #{tpu_custom_call.1} parent=251 // pred_fallthru
        _
      // Predicated region
      $region257: #{tpu_custom_call.1} parent=251 // pred_check
        %p574 = pneg %p570
      $region258: #{tpu_custom_call.1} parent=251 // pred_check_branch
        %576 = sbr.rel (%p574) target = $region260
      $region259: #{tpu_custom_call.1} parent=251 // pred_region
        %s577 = sshll.u32 1, 1
        %s578 = ssub.s32 %s577, 1
        loop: start=0, step=1, limit=1
        $region261: #{tpu_custom_call.1} parent=259 // loop_pre_header
          _
        $region262: #{tpu_custom_call.1} parent=259 // loop_header
          %s580 = sphi 0, %s584
          %p581 = scmp.ge.s32.totalorder %s580, 1
          %s585 = sphi %s562, %s562
          %s586 = sphi %s567, %s567
        $region263: #{tpu_custom_call.1} parent=259 // loop_header_branch
          %583 = sbr.rel (%p581) target = $region267
        $region264: #{tpu_custom_call.1} parent=259 // loop_body
          %v587 = vld [vmem:[%s585] sm:%s578]
          %588 = vst [vmem:[%s586] sm:%s578] %v587
          %v589 = vld [vmem:[%s585 + $0x8] sm:%s578]
          %590 = vst [vmem:[%s586 + $0x8] sm:%s578] %v589
          %v591 = vld [vmem:[%s585 + $0x10] sm:%s578]
          %592 = vst [vmem:[%s586 + $0x10] sm:%s578] %v591
        $region265: #{tpu_custom_call.1} parent=259 // loop_footer
          %s584 = sadd.s32 1, %s580
        $region266: #{tpu_custom_call.1} parent=259 // loop_footer_branch
          %579 = sbr.rel target = $region262
        $region267: #{tpu_custom_call.1} parent=259 // loop_exit
          _
      $region260: #{tpu_custom_call.1} parent=251 // pred_fallthru
        _
      // Predicated region
      $region279: #{tpu_custom_call.1} parent=251 // pred_check
        _
      $region280: #{tpu_custom_call.1} parent=251 // pred_check_branch
        %621 = sbr.rel (0) target = $region282
      $region281: #{tpu_custom_call.1} parent=251 // pred_region
        %622 = vsyncadd %s568, 48
      $region282: #{tpu_custom_call.1} parent=251 // pred_fallthru
        _
    $region252: #{tpu_custom_call.1} parent=245 // pred_fallthru
      _
  $region246: #{tpu_custom_call.1} parent=0 // loop_footer
    %s520 = sadd.s32 1, %s516
  $region247: #{tpu_custom_call.1} parent=0 // loop_footer_branch
    %515 = sbr.rel target = $region243
  $region248: #{tpu_custom_call.1} parent=0 // loop_exit
    _
  // Predicated region
  $region283: #{tpu_custom_call.1} parent=0 // pred_check
    _
  $region284: #{tpu_custom_call.1} parent=0 // pred_check_branch
    %624 = sbr.rel (0) target = $region286
  $region285: #{tpu_custom_call.1} parent=0 // pred_region
    _
  $region286: #{tpu_custom_call.1} parent=0 // pred_fallthru
    _
  // Predicated region
  $region287: #{tpu_custom_call.1} parent=0 // pred_check
    _
  $region288: #{tpu_custom_call.1} parent=0 // pred_check_branch
    %626 = sbr.rel (0) target = $region290
  $region289: #{tpu_custom_call.1} parent=0 // pred_region
    _
  $region290: #{tpu_custom_call.1} parent=0 // pred_fallthru
    _
  %627 = vsyncmov [#allocation2]
  %s628 = vpop.sfrf %627
  %p629 = scmp.eq.s32.totalorder %s628, 0
  %p630 = pneg %p629
  %632 = shalt.err (%p630)
  %s633 = scalar_lea.sflag [#allocation2], 1
  %634 = vsyncmov %s633
  %s635 = vpop.sfrf %634
  %p636 = scmp.eq.s32.totalorder %s635, 0
  %p637 = pneg %p636
  %639 = shalt.err (%p637)
  %s640 = scalar_lea.sflag [#allocation2], 2
  %641 = vsyncmov %s640
  %s642 = vpop.sfrf %641
  %p643 = scmp.eq.s32.totalorder %s642, 0
  %p644 = pneg %p643
  %646 = shalt.err (%p644)
  %s647 = scalar_lea.sflag [#allocation2], 3
  %648 = vsyncmov %s647
  %s649 = vpop.sfrf %648
  %p650 = scmp.eq.s32.totalorder %s649, 0
  %p651 = pneg %p650
  %653 = shalt.err (%p651)
  %s654 = scalar_lea.sflag [#allocation2], 4
  %655 = vsyncmov %s654
  %s656 = vpop.sfrf %655
  %p657 = scmp.eq.s32.totalorder %s656, 0
  %p658 = pneg %p657
  %660 = shalt.err (%p658)
  %s661 = scalar_lea.sflag [#allocation2], 5
  %662 = vsyncmov %s661
  %s663 = vpop.sfrf %662
  %p664 = scmp.eq.s32.totalorder %s663, 0
  %p665 = pneg %p664
  %667 = shalt.err (%p665)
  %s668 = scalar_lea.sflag [#allocation2], 6
  %669 = vsyncmov %s668
  %s670 = vpop.sfrf %669
  %p671 = scmp.eq.s32.totalorder %s670, 0
  %p672 = pneg %p671
  %674 = shalt.err (%p672)
  %s675 = scalar_lea.sflag [#allocation2], 7
  %676 = vsyncmov %s675
  %s677 = vpop.sfrf %676
  %p678 = scmp.eq.s32.totalorder %s677, 0
  %p679 = pneg %p678
  %681 = shalt.err (%p679)

</llo_original>
